<compile_context>
chip_gen: v6e
topology: v6e:2x2x1
jax: 0.10.0
libtpu: 0.0.40
codegen_flags: <defaults>
</compile_context>

<pallas_src>
import math

import jax
import jax.numpy as jnp
import numpy as np
from jax.experimental import pallas as pl
from jax.experimental.pallas import tpu as pltpu


def _round_up(x: int, m: int) -> int:
    return ((x + m - 1) // m) * m


def _patch_embed_kernel(p1_ref, p2_ref, p3_ref,
                        w1_ref, w2_ref, w3_ref, b_ref, o_ref):
    # p*_ref: (tm, K_each) patch-row tiles   w*_ref: (K_each, E) resident
    # b_ref : (1, E) f32 resident            o_ref : (tm, E)
    acc = jnp.dot(p1_ref[...], w1_ref[...], preferred_element_type=jnp.float32)
    acc += jnp.dot(p2_ref[...], w2_ref[...], preferred_element_type=jnp.float32)
    acc += jnp.dot(p3_ref[...], w3_ref[...], preferred_element_type=jnp.float32)
    o_ref[...] = (acc + b_ref[...]).astype(o_ref.dtype)


def _im2col(x, kh, kw, hp, wp):
    """(B, C, H, W) -> (B*hp*wp, C*kh*kw), stride == kernel (non-overlapping)."""
    B, C, _, _ = x.shape
    x = x[:, :, :hp * kh, :wp * kw]                       # floor-crop like Conv2d
    p = x.reshape(B, C, hp, kh, wp, kw)
    p = p.transpose(0, 2, 4, 1, 3, 5)                     # (B, hp, wp, C, kh, kw)
    return p.reshape(B * hp * wp, C * kh * kw)


def patch_embedding_with_rays(imgs, ray_origins, ray_directions,
                              weight, bias, *, kernel_size, stride=None,
                              block_m=256):
    """imgs/ray_origins/ray_directions: (B, C, H, W);
    weight: (E, 3C, kh, kw) (PyTorch Conv2d layout); bias: (E,).
    Returns (B, Hp*Wp, E)."""
    kh, kw = kernel_size
    if stride is None:
        stride = kernel_size
    assert tuple(stride) == (kh, kw), (
        "only non-overlapping patches (stride == kernel_size) are supported")

    B, C, H, W = imgs.shape
    assert imgs.shape == ray_origins.shape == ray_directions.shape
    cin = 3 * C
    E, cw, khw, kww = weight.shape
    assert cw == cin and (khw, kww) == (kh, kw)

    hp, wp = H // kh, W // kw
    n_patch = hp * wp
    k_each = C * kh * kw

    # ---- wrapper-side layout plumbing (im2col per input), not compute ----
    p1 = _im2col(imgs, kh, kw, hp, wp)
    p2 = _im2col(ray_origins, kh, kw, hp, wp)
    p3 = _im2col(ray_directions, kh, kw, hp, wp)

    # Weight slabs matching the channel-concat order [imgs, origins, dirs].
    def _w_slab(lo):
        return weight[:, lo:lo + C].reshape(E, k_each).T   # (K_each, E)
    w1, w2, w3 = _w_slab(0), _w_slab(C), _w_slab(2 * C)
    b_row = bias.astype(jnp.float32).reshape(1, E)

    # Lane-dense output: pad E to a multiple of 128 (sliced off at the end).
    e_pad = _round_up(E, 128)
    if e_pad != E:
        pad_e = ((0, 0), (0, e_pad - E))
        w1, w2, w3 = (jnp.pad(w, pad_e) for w in (w1, w2, w3))
        b_row = jnp.pad(b_row, pad_e)

    rows = B * n_patch
    tm = min(block_m, _round_up(rows, 8))
    rows_p = _round_up(rows, tm)
    if rows_p != rows:
        pad_r = ((0, rows_p - rows), (0, 0))
        p1, p2, p3 = (jnp.pad(p, pad_r) for p in (p1, p2, p3))

    row_spec = pl.BlockSpec((tm, k_each), lambda i: (i, 0))
    w_spec = pl.BlockSpec((k_each, e_pad), lambda i: (0, 0))

    out = pl.pallas_call(
        _patch_embed_kernel,
        out_shape=jax.ShapeDtypeStruct((rows_p, e_pad), imgs.dtype),
        grid_spec=pltpu.PrefetchScalarGridSpec(
            num_scalar_prefetch=0,
            grid=(rows_p // tm,),
            in_specs=[
                row_spec, row_spec, row_spec,             # patch-row tiles
                w_spec, w_spec, w_spec,                   # resident weights
                pl.BlockSpec((1, e_pad), lambda i: (0, 0)),  # resident bias
            ],
            out_specs=pl.BlockSpec((tm, e_pad), lambda i: (i, 0)),
        ),
        compiler_params=pltpu.CompilerParams(
            dimension_semantics=("parallel",)),
    )(p1, p2, p3, w1, w2, w3, b_row)

    return out[:rows, :E].reshape(B, n_patch, E)


def patch_embedding_reference(imgs, ray_origins, ray_directions,
                              weight, bias, *, kernel_size):
    """Pure-JAX reference mirroring the PyTorch forward (Conv2d path)."""
    kh, kw = kernel_size
    x = jnp.concatenate([imgs, ray_origins, ray_directions], axis=1)
    y = jax.lax.conv_general_dilated(
        x, weight, window_strides=(kh, kw), padding='VALID',
        dimension_numbers=('NCHW', 'OIHW', 'NCHW'))
    y = y + bias[None, :, None, None]
    B, E, hp, wp = y.shape
    return y.reshape(B, E, hp * wp).transpose(0, 2, 1)


if __name__ == "__main__":
    # Small shapes consistent with the module: in_channels = 3*C = 9,
    # square 4x4 patches, embed_dim a multiple of 128 for lane-dense output.
    B, C, H, W = 2, 3, 32, 32
    embed_dim = 128
    kernel_size = (4, 4)

    cin = 3 * C
    kh, kw = kernel_size
    fan_in = cin * kh * kw

    key = jax.random.PRNGKey(0)
    k_img, k_ro, k_rd, k_w, k_b = jax.random.split(key, 5)

    imgs = jax.random.normal(k_img, (B, C, H, W), dtype=jnp.float32)
    ray_origins = jax.random.normal(k_ro, (B, C, H, W), dtype=jnp.float32)
    ray_directions = jax.random.normal(k_rd, (B, C, H, W), dtype=jnp.float32)

    # Deterministic PyTorch-Conv2d-like init bounds.
    bound = 1.0 / math.sqrt(fan_in)
    weight = jax.random.uniform(k_w, (embed_dim, cin, kh, kw), jnp.float32,
                                -bound, bound)
    bias = jax.random.uniform(k_b, (embed_dim,), jnp.float32, -bound, bound)

    out = patch_embedding_with_rays(
        imgs, ray_origins, ray_directions, weight, bias,
        kernel_size=kernel_size, block_m=64)   # 128 rows -> grid of 2 tiles
    out = jax.block_until_ready(out)

    ref = patch_embedding_reference(
        imgs, ray_origins, ray_directions, weight, bias,
        kernel_size=kernel_size)

    np.testing.assert_allclose(np.asarray(out), np.asarray(ref),
                               rtol=1e-4, atol=1e-4)
    print("KERNEL_OK")
</pallas_src>

<mosaic_0001>
module attributes {stable_mosaic.version = 11 : i64} {
  func.func @_patch_embed_kernel(%arg0: i32, %arg1: memref<64x48xf32, #tpu.memory_space<vmem>>, %arg2: memref<64x48xf32, #tpu.memory_space<vmem>>, %arg3: memref<64x48xf32, #tpu.memory_space<vmem>>, %arg4: memref<48x128xf32, #tpu.memory_space<vmem>>, %arg5: memref<48x128xf32, #tpu.memory_space<vmem>>, %arg6: memref<48x128xf32, #tpu.memory_space<vmem>>, %arg7: memref<1x128xf32, #tpu.memory_space<vmem>>, %arg8: memref<64x128xf32, #tpu.memory_space<vmem>>) attributes {dimension_semantics = [#tpu.dimension_semantics<parallel>], iteration_bounds = array<i64: 2>, scalar_prefetch = 0 : i64, scratch_operands = 0 : i64, tpu.core_type = #tpu.core_type<tc>, window_params = [{transform_indices = @transform_0, window_bounds = array<i64: 64, 48>}, {transform_indices = @transform_1, window_bounds = array<i64: 64, 48>}, {transform_indices = @transform_2, window_bounds = array<i64: 64, 48>}, {pipeline_mode = #tpu.pipeline_mode<synchronous>, transform_indices = @transform_3, window_bounds = array<i64: 48, 128>}, {pipeline_mode = #tpu.pipeline_mode<synchronous>, transform_indices = @transform_4, window_bounds = array<i64: 48, 128>}, {pipeline_mode = #tpu.pipeline_mode<synchronous>, transform_indices = @transform_5, window_bounds = array<i64: 48, 128>}, {pipeline_mode = #tpu.pipeline_mode<synchronous>, transform_indices = @transform_6, window_bounds = array<i64: 1, 128>}, {transform_indices = @transform_7, window_bounds = array<i64: 64, 128>}]} {
    %c0 = arith.constant 0 : index
    %c0_0 = arith.constant 0 : index
    %0 = vector.load %arg1[%c0, %c0_0] : memref<64x48xf32, #tpu.memory_space<vmem>>, vector<64x48xf32>
    %c0_1 = arith.constant 0 : index
    %c0_2 = arith.constant 0 : index
    %1 = vector.load %arg4[%c0_1, %c0_2] : memref<48x128xf32, #tpu.memory_space<vmem>>, vector<48x128xf32>
    %cst = arith.constant dense<0.000000e+00> : vector<64x128xf32>
    %2 = tpu.matmul %0, %1, %cst {dimension_numbers = #tpu.dot_dimension_numbers<[1], [0], [0], [1], [0, 0, 1, 1], [], []>} : vector<64x48xf32>, vector<48x128xf32>, vector<64x128xf32> -> vector<64x128xf32>
    %c0_3 = arith.constant 0 : index
    %c0_4 = arith.constant 0 : index
    %3 = vector.load %arg2[%c0_3, %c0_4] : memref<64x48xf32, #tpu.memory_space<vmem>>, vector<64x48xf32>
    %c0_5 = arith.constant 0 : index
    %c0_6 = arith.constant 0 : index
    %4 = vector.load %arg5[%c0_5, %c0_6] : memref<48x128xf32, #tpu.memory_space<vmem>>, vector<48x128xf32>
    %cst_7 = arith.constant dense<0.000000e+00> : vector<64x128xf32>
    %5 = tpu.matmul %3, %4, %cst_7 {dimension_numbers = #tpu.dot_dimension_numbers<[1], [0], [0], [1], [0, 0, 1, 1], [], []>} : vector<64x48xf32>, vector<48x128xf32>, vector<64x128xf32> -> vector<64x128xf32>
    %6 = arith.addf %2, %5 : vector<64x128xf32>
    %c0_8 = arith.constant 0 : index
    %c0_9 = arith.constant 0 : index
    %7 = vector.load %arg3[%c0_8, %c0_9] : memref<64x48xf32, #tpu.memory_space<vmem>>, vector<64x48xf32>
    %c0_10 = arith.constant 0 : index
    %c0_11 = arith.constant 0 : index
    %8 = vector.load %arg6[%c0_10, %c0_11] : memref<48x128xf32, #tpu.memory_space<vmem>>, vector<48x128xf32>
    %cst_12 = arith.constant dense<0.000000e+00> : vector<64x128xf32>
    %9 = tpu.matmul %7, %8, %cst_12 {dimension_numbers = #tpu.dot_dimension_numbers<[1], [0], [0], [1], [0, 0, 1, 1], [], []>} : vector<64x48xf32>, vector<48x128xf32>, vector<64x128xf32> -> vector<64x128xf32>
    %10 = arith.addf %6, %9 : vector<64x128xf32>
    %c0_13 = arith.constant 0 : index
    %c0_14 = arith.constant 0 : index
    %11 = vector.load %arg7[%c0_13, %c0_14] : memref<1x128xf32, #tpu.memory_space<vmem>>, vector<1x128xf32>
    %12 = vector.broadcast %11 : vector<1x128xf32> to vector<64x128xf32>
    %13 = arith.addf %10, %12 : vector<64x128xf32>
    %c0_15 = arith.constant 0 : index
    %c0_16 = arith.constant 0 : index
    %14 = vector.load %arg8[%c0_15, %c0_16] : memref<64x128xf32, #tpu.memory_space<vmem>>, vector<64x128xf32>
    tpu.vector_store %arg8[%c0_15, %c0_16], %13 {strides = array<i32>} : memref<64x128xf32, #tpu.memory_space<vmem>>, vector<64x128xf32>,
    return
  }
  func.func @transform_0(%arg0: i32) -> (i32, i32) {
    %c0_i32 = arith.constant 0 : i32
    %c0_i32_0 = arith.constant 0 : i32
    return %arg0, %c0_i32 : i32, i32
  }
  func.func @transform_1(%arg0: i32) -> (i32, i32) {
    %c0_i32 = arith.constant 0 : i32
    %c0_i32_0 = arith.constant 0 : i32
    return %arg0, %c0_i32 : i32, i32
  }
  func.func @transform_2(%arg0: i32) -> (i32, i32) {
    %c0_i32 = arith.constant 0 : i32
    %c0_i32_0 = arith.constant 0 : i32
    return %arg0, %c0_i32 : i32, i32
  }
  func.func @transform_3(%arg0: i32) -> (i32, i32) {
    %c0_i32 = arith.constant 0 : i32
    %c0_i32_0 = arith.constant 0 : i32
    %c0_i32_1 = arith.constant 0 : i32
    return %c0_i32, %c0_i32_0 : i32, i32
  }
  func.func @transform_4(%arg0: i32) -> (i32, i32) {
    %c0_i32 = arith.constant 0 : i32
    %c0_i32_0 = arith.constant 0 : i32
    %c0_i32_1 = arith.constant 0 : i32
    return %c0_i32, %c0_i32_0 : i32, i32
  }
  func.func @transform_5(%arg0: i32) -> (i32, i32) {
    %c0_i32 = arith.constant 0 : i32
    %c0_i32_0 = arith.constant 0 : i32
    %c0_i32_1 = arith.constant 0 : i32
    return %c0_i32, %c0_i32_0 : i32, i32
  }
  func.func @transform_6(%arg0: i32) -> (i32, i32) {
    %c0_i32 = arith.constant 0 : i32
    %c0_i32_0 = arith.constant 0 : i32
    %c0_i32_1 = arith.constant 0 : i32
    return %c0_i32, %c0_i32_0 : i32, i32
  }
  func.func @transform_7(%arg0: i32) -> (i32, i32) {
    %c0_i32 = arith.constant 0 : i32
    %c0_i32_0 = arith.constant 0 : i32
    return %arg0, %c0_i32 : i32, i32
  }
}

</mosaic_0001>

<llo_original>
// kernel: tpu_custom_call.1
$region0: #{tpu_custom_call.1}
  #allocation0 [shape = 'u32[]', space=smem, size = 0x4, offset = 0x4, fixed_abs, tag = 'smem constant byte address 0x4 - core index']
  #allocation1 [shape = 'u32[144,128]{1,0:T(1,128)}', space=vmem, size = 0x12000, scoped, tag = 'internal scratch']
  %s0 = inlined_call_operand.vmem [shape: f32[128,48], index: 0, kind: input, shape index: {}]
  %s1 = inlined_call_operand.vmem [shape: f32[128,48], index: 1, kind: input, shape index: {}]
  %s2 = inlined_call_operand.vmem [shape: f32[128,48], index: 2, kind: input, shape index: {}]
  %s3 = inlined_call_operand.vmem [shape: f32[48,128], index: 3, kind: input, shape index: {}]
  %s4 = inlined_call_operand.vmem [shape: f32[48,128], index: 4, kind: input, shape index: {}]
  %s5 = inlined_call_operand.vmem [shape: f32[48,128], index: 5, kind: input, shape index: {}]
  %s6 = inlined_call_operand.vmem [shape: f32[1,128], index: 6, kind: input, shape index: {}]
  %s7 = inlined_call_operand.hbm [shape: f32[128,128], index: 7, kind: output, shape index: {}]
  %s8 = sld [smem:[#allocation0]]
  $region61: #{tpu_custom_call.1} parent=0
    _
  %s10 = ssub.s32 1, %s8
  %s11 = scalar_select 0, %s10, %s8
  $region1: #{tpu_custom_call.1} parent=0
    #allocation2 [shape = 'u8[65536]{0}', space=vmem, size = 0x10000, scoped, tag = 'output window, operand 0']
    #allocation3 [shape = 's32[2]{0}', space=sflag, size = 0x8, scoped, tag = 'scoped memory for tpu_custom_call.1']
    %12 = vsyncpa [#allocation3], 0
    %s13 = scalar_lea.sflag [#allocation3], 1
    %14 = vsyncpa %s13, 0
    loop: start=0, step=1, limit=4
    $region2: #{tpu_custom_call.1} parent=1 // loop_pre_header
      _
    $region3: #{tpu_custom_call.1} parent=1 // loop_header
      %s16 = sphi 0, %s20
      %p17 = scmp.ge.s32.totalorder %s16, 4
      %s26 = sphi 0, %s28
      %s29 = sphi 0, %s26
      %s30 = sphi 0, %s29
      %s46 = sphi 0, %s30
      %s52 = sphi 0, %s54
      %s55 = sphi 0, %s52
      %s56 = sphi 0, %s55
      %s72 = sphi 0, %s56
      %s78 = sphi 0, %s80
      %s81 = sphi 0, %s78
      %s82 = sphi 0, %s81
      %s98 = sphi 0, %s82
      %s102 = sphi 0, %s102
      %s104 = sphi 0, %s102
      %s105 = sphi 0, %s104
      %s119 = sphi 0, %s105
      %s123 = sphi 0, %s123
      %s125 = sphi 0, %s123
      %s126 = sphi 0, %s125
      %s140 = sphi 0, %s126
      %s144 = sphi 0, %s144
      %s146 = sphi 0, %s144
      %s147 = sphi 0, %s146
      %s161 = sphi 0, %s147
      %s165 = sphi 0, %s165
      %s167 = sphi 0, %s165
      %s168 = sphi 0, %s167
      %s182 = sphi 0, %s168
      %s188 = sphi 0, %s190
      %s191 = sphi 0, %s188
      %s192 = sphi 0, %s191
      %s208 = sphi 0, %s192
    $region4: #{tpu_custom_call.1} parent=1 // loop_header_branch
      %19 = sbr.rel (%p17) target = $region8
    $region5: #{tpu_custom_call.1} parent=1 // loop_body
      %s21 = ssub.s32 %s16, 1
      %s22 = ssub.s32 %s16, 2
      %s23 = sadd.s32 %s16, 1
      %s24 = ssub.s32 %s16, %s23
      %p25 = scmp.eq.s32.totalorder %s24, 0
      %s27 = sadd.s32 %s26, 1
      %s28 = scalar_select %p25, %s26, %s27
      %p31 = pneg %p25
      %p32 = scmp.eq.s32.totalorder %s16, 1
      %p33 = por %p31, %p32
      %p34 = scmp.ne.s32.totalorder %s26, %s29
      %p35 = scmp.eq.s32.totalorder %s16, 0
      %p36 = por %p34, %p35
      %p37 = scmp.ne.s32.totalorder %s26, %s29
      %p38 = scmp.eq.s32.totalorder %s21, 1
      %p39 = por %p37, %p38
      %p40 = scmp.ne.s32.totalorder %s29, %s30
      %p41 = scmp.eq.s32.totalorder %s21, 0
      %p42 = por %p40, %p41
      %p43 = scmp.ne.s32.totalorder %s29, %s30
      %p44 = scmp.eq.s32.totalorder %s22, 1
      %p45 = por %p43, %p44
      %p47 = scmp.ne.s32.totalorder %s30, %s46
      %p48 = scmp.eq.s32.totalorder %s22, 0
      %p49 = por %p47, %p48
      %s50 = ssub.s32 %s16, %s23
      %p51 = scmp.eq.s32.totalorder %s50, 0
      %s53 = sadd.s32 %s52, 1
      %s54 = scalar_select %p51, %s52, %s53
      %p57 = pneg %p51
      %p58 = scmp.eq.s32.totalorder %s16, 1
      %p59 = por %p57, %p58
      %p60 = scmp.ne.s32.totalorder %s52, %s55
      %p61 = scmp.eq.s32.totalorder %s16, 0
      %p62 = por %p60, %p61
      %p63 = scmp.ne.s32.totalorder %s52, %s55
      %p64 = scmp.eq.s32.totalorder %s21, 1
      %p65 = por %p63, %p64
      %p66 = scmp.ne.s32.totalorder %s55, %s56
      %p67 = scmp.eq.s32.totalorder %s21, 0
      %p68 = por %p66, %p67
      %p69 = scmp.ne.s32.totalorder %s55, %s56
      %p70 = scmp.eq.s32.totalorder %s22, 1
      %p71 = por %p69, %p70
      %p73 = scmp.ne.s32.totalorder %s56, %s72
      %p74 = scmp.eq.s32.totalorder %s22, 0
      %p75 = por %p73, %p74
      %s76 = ssub.s32 %s16, %s23
      %p77 = scmp.eq.s32.totalorder %s76, 0
      %s79 = sadd.s32 %s78, 1
      %s80 = scalar_select %p77, %s78, %s79
      %p83 = pneg %p77
      %p84 = scmp.eq.s32.totalorder %s16, 1
      %p85 = por %p83, %p84
      %p86 = scmp.ne.s32.totalorder %s78, %s81
      %p87 = scmp.eq.s32.totalorder %s16, 0
      %p88 = por %p86, %p87
      %p89 = scmp.ne.s32.totalorder %s78, %s81
      %p90 = scmp.eq.s32.totalorder %s21, 1
      %p91 = por %p89, %p90
      %p92 = scmp.ne.s32.totalorder %s81, %s82
      %p93 = scmp.eq.s32.totalorder %s21, 0
      %p94 = por %p92, %p93
      %p95 = scmp.ne.s32.totalorder %s81, %s82
      %p96 = scmp.eq.s32.totalorder %s22, 1
      %p97 = por %p95, %p96
      %p99 = scmp.ne.s32.totalorder %s82, %s98
      %p100 = scmp.eq.s32.totalorder %s22, 0
      %p101 = por %p99, %p100
      %s103 = sadd.s32 %s102, 1
      %p106 = scmp.eq.s32.totalorder %s16, 1
      %p107 = scmp.ne.s32.totalorder %s102, %s104
      %p108 = scmp.eq.s32.totalorder %s16, 0
      %p109 = por %p107, %p108
      %p110 = scmp.ne.s32.totalorder %s102, %s104
      %p111 = scmp.eq.s32.totalorder %s21, 1
      %p112 = por %p110, %p111
      %p113 = scmp.ne.s32.totalorder %s104, %s105
      %p114 = scmp.eq.s32.totalorder %s21, 0
      %p115 = por %p113, %p114
      %p116 = scmp.ne.s32.totalorder %s104, %s105
      %p117 = scmp.eq.s32.totalorder %s22, 1
      %p118 = por %p116, %p117
      %p120 = scmp.ne.s32.totalorder %s105, %s119
      %p121 = scmp.eq.s32.totalorder %s22, 0
      %p122 = por %p120, %p121
      %s124 = sadd.s32 %s123, 1
      %p127 = scmp.eq.s32.totalorder %s16, 1
      %p128 = scmp.ne.s32.totalorder %s123, %s125
      %p129 = scmp.eq.s32.totalorder %s16, 0
      %p130 = por %p128, %p129
      %p131 = scmp.ne.s32.totalorder %s123, %s125
      %p132 = scmp.eq.s32.totalorder %s21, 1
      %p133 = por %p131, %p132
      %p134 = scmp.ne.s32.totalorder %s125, %s126
      %p135 = scmp.eq.s32.totalorder %s21, 0
      %p136 = por %p134, %p135
      %p137 = scmp.ne.s32.totalorder %s125, %s126
      %p138 = scmp.eq.s32.totalorder %s22, 1
      %p139 = por %p137, %p138
      %p141 = scmp.ne.s32.totalorder %s126, %s140
      %p142 = scmp.eq.s32.totalorder %s22, 0
      %p143 = por %p141, %p142
      %s145 = sadd.s32 %s144, 1
      %p148 = scmp.eq.s32.totalorder %s16, 1
      %p149 = scmp.ne.s32.totalorder %s144, %s146
      %p150 = scmp.eq.s32.totalorder %s16, 0
      %p151 = por %p149, %p150
      %p152 = scmp.ne.s32.totalorder %s144, %s146
      %p153 = scmp.eq.s32.totalorder %s21, 1
      %p154 = por %p152, %p153
      %p155 = scmp.ne.s32.totalorder %s146, %s147
      %p156 = scmp.eq.s32.totalorder %s21, 0
      %p157 = por %p155, %p156
      %p158 = scmp.ne.s32.totalorder %s146, %s147
      %p159 = scmp.eq.s32.totalorder %s22, 1
      %p160 = por %p158, %p159
      %p162 = scmp.ne.s32.totalorder %s147, %s161
      %p163 = scmp.eq.s32.totalorder %s22, 0
      %p164 = por %p162, %p163
      %s166 = sadd.s32 %s165, 1
      %p169 = scmp.eq.s32.totalorder %s16, 1
      %p170 = scmp.ne.s32.totalorder %s165, %s167
      %p171 = scmp.eq.s32.totalorder %s16, 0
      %p172 = por %p170, %p171
      %p173 = scmp.ne.s32.totalorder %s165, %s167
      %p174 = scmp.eq.s32.totalorder %s21, 1
      %p175 = por %p173, %p174
      %p176 = scmp.ne.s32.totalorder %s167, %s168
      %p177 = scmp.eq.s32.totalorder %s21, 0
      %p178 = por %p176, %p177
      %p179 = scmp.ne.s32.totalorder %s167, %s168
      %p180 = scmp.eq.s32.totalorder %s22, 1
      %p181 = por %p179, %p180
      %p183 = scmp.ne.s32.totalorder %s168, %s182
      %p184 = scmp.eq.s32.totalorder %s22, 0
      %p185 = por %p183, %p184
      %s186 = ssub.s32 %s16, %s23
      %p187 = scmp.eq.s32.totalorder %s186, 0
      %s189 = sadd.s32 %s188, 1
      %s190 = scalar_select %p187, %s188, %s189
      %p193 = pneg %p187
      %p194 = scmp.eq.s32.totalorder %s16, 1
      %p195 = por %p193, %p194
      %p196 = scmp.ne.s32.totalorder %s188, %s191
      %p197 = scmp.eq.s32.totalorder %s16, 0
      %p198 = por %p196, %p197
      %p199 = scmp.ne.s32.totalorder %s188, %s191
      %p200 = scmp.eq.s32.totalorder %s21, 1
      %p201 = por %p199, %p200
      %p202 = scmp.ne.s32.totalorder %s191, %s192
      %p203 = scmp.eq.s32.totalorder %s21, 0
      %p204 = por %p202, %p203
      %p205 = scmp.ne.s32.totalorder %s191, %s192
      %p206 = scmp.eq.s32.totalorder %s22, 1
      %p207 = por %p205, %p206
      %p209 = scmp.ne.s32.totalorder %s192, %s208
      %p210 = scmp.eq.s32.totalorder %s22, 0
      %p211 = por %p209, %p210
      %p212 = scmp.le.s32.totalorder 1, %s16
      %p213 = scmp.lt.s32.totalorder %s16, 3
      %p214 = pnand %p212, %p213
      %p215 = pneg %p214
      // Predicated region
      $region9: #{tpu_custom_call.1} parent=5 // pred_check
        _
      $region10: #{tpu_custom_call.1} parent=5 // pred_check_branch
        %217 = sbr.rel (%p214) target = $region12
      $region11: #{tpu_custom_call.1} parent=5 // pred_region
        %s218 = ssub.s32 %s16, 1
        // Predicated region
        $region13: #{tpu_custom_call.1} parent=11 // pred_check
          %p219 = pneg %p115
        $region14: #{tpu_custom_call.1} parent=11 // pred_check_branch
          %221 = sbr.rel (%p219) target = $region16
        $region15: #{tpu_custom_call.1} parent=11 // pred_region
          _
        $region16: #{tpu_custom_call.1} parent=11 // pred_fallthru
          _
        // Predicated region
        $region17: #{tpu_custom_call.1} parent=11 // pred_check
          %p222 = pneg %p136
        $region18: #{tpu_custom_call.1} parent=11 // pred_check_branch
          %224 = sbr.rel (%p222) target = $region20
        $region19: #{tpu_custom_call.1} parent=11 // pred_region
          _
        $region20: #{tpu_custom_call.1} parent=11 // pred_fallthru
          _
        // Predicated region
        $region21: #{tpu_custom_call.1} parent=11 // pred_check
          %p225 = pneg %p157
        $region22: #{tpu_custom_call.1} parent=11 // pred_check_branch
          %227 = sbr.rel (%p225) target = $region24
        $region23: #{tpu_custom_call.1} parent=11 // pred_region
          _
        $region24: #{tpu_custom_call.1} parent=11 // pred_fallthru
          _
        // Predicated region
        $region25: #{tpu_custom_call.1} parent=11 // pred_check
          %p228 = pneg %p178
        $region26: #{tpu_custom_call.1} parent=11 // pred_check_branch
          %230 = sbr.rel (%p228) target = $region28
        $region27: #{tpu_custom_call.1} parent=11 // pred_region
          _
        $region28: #{tpu_custom_call.1} parent=11 // pred_fallthru
          _
      $region12: #{tpu_custom_call.1} parent=5 // pred_fallthru
        _
      %p231 = scmp.lt.s32.totalorder %s16, 2
      // Predicated region
      $region29: #{tpu_custom_call.1} parent=5 // pred_check
        %p232 = pneg %p231
      $region30: #{tpu_custom_call.1} parent=5 // pred_check_branch
        %234 = sbr.rel (%p232) target = $region32
      $region31: #{tpu_custom_call.1} parent=5 // pred_region
        // Predicated region
        $region33: #{tpu_custom_call.1} parent=31 // pred_check
          %p235 = pneg %p36
        $region34: #{tpu_custom_call.1} parent=31 // pred_check_branch
          %237 = sbr.rel (%p235) target = $region36
        $region35: #{tpu_custom_call.1} parent=31 // pred_region
          %s238 = smul.u32 8, %s16
          %p239 = scmp.lt.s32.totalorder %s238, 15
          %s240 = scalar_select %p239, %s238, 15
          %s241 = smul.addr %s240, 8
          %s242 = scalar_lea.vmem %s0, %s241
          %s243 = smul.u32 8, %s16
        $region36: #{tpu_custom_call.1} parent=31 // pred_fallthru
          _
        // Predicated region
        $region37: #{tpu_custom_call.1} parent=31 // pred_check
          %p244 = pneg %p62
        $region38: #{tpu_custom_call.1} parent=31 // pred_check_branch
          %246 = sbr.rel (%p244) target = $region40
        $region39: #{tpu_custom_call.1} parent=31 // pred_region
          %s247 = smul.u32 8, %s16
          %p248 = scmp.lt.s32.totalorder %s247, 15
          %s249 = scalar_select %p248, %s247, 15
          %s250 = smul.addr %s249, 8
          %s251 = scalar_lea.vmem %s1, %s250
          %s252 = smul.u32 8, %s16
        $region40: #{tpu_custom_call.1} parent=31 // pred_fallthru
          _
        // Predicated region
        $region41: #{tpu_custom_call.1} parent=31 // pred_check
          %p253 = pneg %p88
        $region42: #{tpu_custom_call.1} parent=31 // pred_check_branch
          %255 = sbr.rel (%p253) target = $region44
        $region43: #{tpu_custom_call.1} parent=31 // pred_region
          %s256 = smul.u32 8, %s16
          %p257 = scmp.lt.s32.totalorder %s256, 15
          %s258 = scalar_select %p257, %s256, 15
          %s259 = smul.addr %s258, 8
          %s260 = scalar_lea.vmem %s2, %s259
          %s261 = smul.u32 8, %s16
        $region44: #{tpu_custom_call.1} parent=31 // pred_fallthru
          _
      $region32: #{tpu_custom_call.1} parent=5 // pred_fallthru
        _
      %p262 = scmp.le.s32.totalorder 1, %s16
      %p263 = scmp.lt.s32.totalorder %s16, 3
      %p264 = pnand %p262, %p263
      %p265 = pneg %p264
      // Predicated region
      $region45: #{tpu_custom_call.1} parent=5 // pred_check
        _
      $region46: #{tpu_custom_call.1} parent=5 // pred_check_branch
        %267 = sbr.rel (%p264) target = $region48
      $region47: #{tpu_custom_call.1} parent=5 // pred_region
        %s268 = ssub.s32 %s16, 1
        %s269 = smul.u32 8, %s21
        %p270 = scmp.lt.s32.totalorder %s269, 15
        %s271 = scalar_select %p270, %s269, 15
        %s272 = smul.addr %s271, 8
        %s273 = scalar_lea.vmem %s0, %s272
        %p274 = pneg %p42
        %p275 = pneg %p39
        %s276 = smul.u32 8, %s21
        %p277 = scmp.lt.s32.totalorder %s276, 15
        %s278 = scalar_select %p277, %s276, 15
        %s279 = smul.addr %s278, 8
        %s280 = scalar_lea.vmem %s1, %s279
        %p281 = pneg %p68
        %p282 = pneg %p65
        %s283 = smul.u32 8, %s21
        %p284 = scmp.lt.s32.totalorder %s283, 15
        %s285 = scalar_select %p284, %s283, 15
        %s286 = smul.addr %s285, 8
        %s287 = scalar_lea.vmem %s2, %s286
        %p288 = pneg %p94
        %p289 = pneg %p91
        %p290 = pneg %p115
        %p291 = pneg %p112
        %p292 = pneg %p136
        %p293 = pneg %p133
        %p294 = pneg %p157
        %p295 = pneg %p154
        %p296 = pneg %p178
        %p297 = pneg %p175
        %p298 = pneg %p204
        %p299 = pneg %p201
        %s300 = sand.u32 %s191, 1
        %s301 = scalar_lea.sflag [#allocation3], %s300
        %s302 = sand.u32 %s191, 1
        %s303 = smul.addr %s302, 64
        %s304 = scalar_lea.vmem [#allocation2], %s303
        %s305 = smul.u32 8, %s21
        %p306 = scmp.lt.s32.totalorder %s305, 15
        %s307 = scalar_select %p306, %s305, 15
        %s308 = smul.addr %s307, 8
        %s309 = scalar_lea.vmem %s0, %s308
        %s310 = smul.u32 8, %s21
        %s311 = smul.u32 8, %s21
        %p312 = scmp.lt.s32.totalorder %s311, 15
        %s313 = scalar_select %p312, %s311, 15
        %s314 = smul.addr %s313, 8
        %s315 = scalar_lea.vmem %s1, %s314
        %s316 = smul.u32 8, %s21
        %s317 = smul.u32 8, %s21
        %p318 = scmp.lt.s32.totalorder %s317, 15
        %s319 = scalar_select %p318, %s317, 15
        %s320 = smul.addr %s319, 8
        %s321 = scalar_lea.vmem %s2, %s320
        %s322 = smul.u32 8, %s21
        %s323 = smul.u32 8, %s21
        %v324 = vld [vmem:[%s309] sm:$0xff]
        %v325 = vld [vmem:[%s309 + $0x8] sm:$0xff]
        %v326 = vld [vmem:[%s309 + $0x10] sm:$0xff]
        %v327 = vld [vmem:[%s309 + $0x18] sm:$0xff]
        %v328 = vld [vmem:[%s309 + $0x20] sm:$0xff]
        %v329 = vld [vmem:[%s309 + $0x28] sm:$0xff]
        %v330 = vld [vmem:[%s309 + $0x30] sm:$0xff]
        %v331 = vld [vmem:[%s309 + $0x38] sm:$0xff]
        %v332 = vld [vmem:[%s3] sm:$0xff]
        %v333 = vld [vmem:[%s3 + $0x8] sm:$0xff]
        %v334 = vld [vmem:[%s3 + $0x10] sm:$0xff]
        %v335 = vld [vmem:[%s3 + $0x18] sm:$0xff]
        %v336 = vld [vmem:[%s3 + $0x20] sm:$0xff]
        %v337 = vld [vmem:[%s3 + $0x28] sm:$0xff]
        %v338 = vld [vmem:[%s315] sm:$0xff]
        %v339 = vld [vmem:[%s315 + $0x8] sm:$0xff]
        %v340 = vld [vmem:[%s315 + $0x10] sm:$0xff]
        %v341 = vld [vmem:[%s315 + $0x18] sm:$0xff]
        %v342 = vld [vmem:[%s315 + $0x20] sm:$0xff]
        %v343 = vld [vmem:[%s315 + $0x28] sm:$0xff]
        %v344 = vld [vmem:[%s315 + $0x30] sm:$0xff]
        %v345 = vld [vmem:[%s315 + $0x38] sm:$0xff]
        %v346 = vld [vmem:[%s4] sm:$0xff]
        %v347 = vld [vmem:[%s4 + $0x8] sm:$0xff]
        %v348 = vld [vmem:[%s4 + $0x10] sm:$0xff]
        %v349 = vld [vmem:[%s4 + $0x18] sm:$0xff]
        %v350 = vld [vmem:[%s4 + $0x20] sm:$0xff]
        %v351 = vld [vmem:[%s4 + $0x28] sm:$0xff]
        %vm352 = vcmask 392192
        %v354 = vsel %vm352, %v338, 0
        %v357 = vsel %vm352, %v339, 0
        %v360 = vsel %vm352, %v340, 0
        %v363 = vsel %vm352, %v341, 0
        %v366 = vsel %vm352, %v342, 0
        %v369 = vsel %vm352, %v343, 0
        %v372 = vsel %vm352, %v344, 0
        %v375 = vsel %vm352, %v345, 0
        %377 = vmatprep.subr.mxu0 0.0
        %378 = vmatpush1.msra.mxu0 0.0
        %379 = vmatprep.subr.mxu0 0.0
        %380 = vmatpush1.msra.mxu0 0.0
        %381 = vmatprep.subr.mxu0 0.0
        %382 = vmatpush1.msra.mxu0 0.0
        %383 = vmatprep.subr.mxu0 0.0
        %384 = vmatpush1.msra.mxu0 0.0
        %385 = vmatprep.subr.mxu0 0.0
        %386 = vmatpush1.msra.mxu0 0.0
        %387 = vmatprep.subr.mxu0 0.0
        %388 = vmatpush1.msra.mxu0 0.0
        %389 = vmatprep.subr.mxu0 0.0
        %390 = vmatpush1.msra.mxu0 0.0
        %391 = vmatprep.subr.mxu0 0.0
        %392 = vmatpush1.msra.mxu0 0.0
        %393 = vmatprep.subr.mxu0 0.0
        %394 = vmatpush1.msra.mxu0 0.0
        %395 = vmatprep.subr.mxu0 0.0
        %396 = vmatpush1.msra.mxu0 0.0
        %397 = vmatprep.subr.mxu0 0.0
        %398 = vmatpush1.msra.mxu0 %v351
        %399 = vmatprep.subr.mxu0 0.0
        %400 = vmatpush1.msra.mxu0 %v350
        %401 = vmatprep.subr.mxu0 0.0
        %402 = vmatpush1.msra.mxu0 %v349
        %403 = vmatprep.subr.mxu0 0.0
        %404 = vmatpush1.msra.mxu0 %v348
        %405 = vmatprep.subr.mxu0 0.0
        %406 = vmatpush1.msra.mxu0 %v347
        %407 = vmatprep.subr.mxu0 0.0
        %408 = vmatpush1.msra.mxu0 %v346
        %409 = vmatprep.subr.mxu0 0.0
        %410 = vmatpush2.msra.mxu0 0.0
        %411 = vmatprep.subr.mxu0 0.0
        %412 = vmatpush2.msra.mxu0 0.0
        %413 = vmatprep.subr.mxu0 0.0
        %414 = vmatpush2.msra.mxu0 0.0
        %415 = vmatprep.subr.mxu0 0.0
        %416 = vmatpush2.msra.mxu0 0.0
        %417 = vmatprep.subr.mxu0 0.0
        %418 = vmatpush2.msra.mxu0 0.0
        %419 = vmatprep.subr.mxu0 0.0
        %420 = vmatpush2.msra.mxu0 0.0
        %421 = vmatprep.subr.mxu0 0.0
        %422 = vmatpush2.msra.mxu0 0.0
        %423 = vmatprep.subr.mxu0 0.0
        %424 = vmatpush2.msra.mxu0 0.0
        %425 = vmatprep.subr.mxu0 0.0
        %426 = vmatpush2.msra.mxu0 0.0
        %427 = vmatprep.subr.mxu0 0.0
        %428 = vmatpush2.msra.mxu0 0.0
        %429 = vmatprep.subr.mxu0 0.0
        %430 = vmatpush2.msra.mxu0 0.0
        %431 = vmatprep.subr.mxu0 0.0
        %432 = vmatpush2.msra.mxu0 0.0
        %433 = vmatprep.subr.mxu0 0.0
        %434 = vmatpush2.msra.mxu0 0.0
        %435 = vmatprep.subr.mxu0 0.0
        %436 = vmatpush2.msra.mxu0 0.0
        %437 = vmatprep.subr.mxu0 0.0
        %438 = vmatpush2.msra.mxu0 0.0
        %439 = vmatprep.subr.mxu0 0.0
        %440 = vmatpush2.msra.mxu0 0.0
        %441 = vmatprep.mubr.f32.mxu0 0.0
        %442 = vmatmul.mubr.f32.gmra.mxu0 %v354
        %v443 = vpop.f32.mrf.mxu0
        %v444 = vadd.f32 0.0, %v443
        %v445 = vpop.f32.mrf.mxu0
        %446 = vmatprep.mubr.f32.mxu0 0.0
        %447 = vmatmul.mubr.f32.gmra.mxu0 %v357
        %v448 = vpop.f32.mrf.mxu0
        %v449 = vadd.f32 0.0, %v448
        %v450 = vpop.f32.mrf.mxu0
        %451 = vmatprep.mubr.f32.mxu0 0.0
        %452 = vmatmul.mubr.f32.gmra.mxu0 %v360
        %v453 = vpop.f32.mrf.mxu0
        %v454 = vadd.f32 0.0, %v453
        %v455 = vpop.f32.mrf.mxu0
        %456 = vmatprep.mubr.f32.mxu0 0.0
        %457 = vmatmul.mubr.f32.gmra.mxu0 %v363
        %v458 = vpop.f32.mrf.mxu0
        %v459 = vadd.f32 0.0, %v458
        %v460 = vpop.f32.mrf.mxu0
        %461 = vmatprep.mubr.f32.mxu0 0.0
        %462 = vmatmul.mubr.f32.gmra.mxu0 %v366
        %v463 = vpop.f32.mrf.mxu0
        %v464 = vadd.f32 0.0, %v463
        %v465 = vpop.f32.mrf.mxu0
        %466 = vmatprep.mubr.f32.mxu0 0.0
        %467 = vmatmul.mubr.f32.gmra.mxu0 %v369
        %v468 = vpop.f32.mrf.mxu0
        %v469 = vadd.f32 0.0, %v468
        %v470 = vpop.f32.mrf.mxu0
        %471 = vmatprep.mubr.f32.mxu0 0.0
        %472 = vmatmul.mubr.f32.gmra.mxu0 %v372
        %v473 = vpop.f32.mrf.mxu0
        %v474 = vadd.f32 0.0, %v473
        %v475 = vpop.f32.mrf.mxu0
        %476 = vmatprep.mubr.f32.mxu0 0.0
        %477 = vmatmul.mubr.f32.gmra.mxu0 %v375
        %v478 = vpop.f32.mrf.mxu0
        %v479 = vadd.f32 0.0, %v478
        %v480 = vpop.f32.mrf.mxu0
        %481 = vdwg.mxu0
        %v483 = vsel %vm352, %v324, 0
        %v486 = vsel %vm352, %v325, 0
        %v489 = vsel %vm352, %v326, 0
        %v492 = vsel %vm352, %v327, 0
        %v495 = vsel %vm352, %v328, 0
        %v498 = vsel %vm352, %v329, 0
        %v501 = vsel %vm352, %v330, 0
        %v504 = vsel %vm352, %v331, 0
        %506 = vmatprep.subr.mxu0 0.0
        %507 = vmatpush1.msra.mxu0 0.0
        %508 = vmatprep.subr.mxu0 0.0
        %509 = vmatpush1.msra.mxu0 0.0
        %510 = vmatprep.subr.mxu0 0.0
        %511 = vmatpush1.msra.mxu0 0.0
        %512 = vmatprep.subr.mxu0 0.0
        %513 = vmatpush1.msra.mxu0 0.0
        %514 = vmatprep.subr.mxu0 0.0
        %515 = vmatpush1.msra.mxu0 0.0
        %516 = vmatprep.subr.mxu0 0.0
        %517 = vmatpush1.msra.mxu0 0.0
        %518 = vmatprep.subr.mxu0 0.0
        %519 = vmatpush1.msra.mxu0 0.0
        %520 = vmatprep.subr.mxu0 0.0
        %521 = vmatpush1.msra.mxu0 0.0
        %522 = vmatprep.subr.mxu0 0.0
        %523 = vmatpush1.msra.mxu0 0.0
        %524 = vmatprep.subr.mxu0 0.0
        %525 = vmatpush1.msra.mxu0 0.0
        %526 = vmatprep.subr.mxu0 0.0
        %527 = vmatpush1.msra.mxu0 %v337
        %528 = vmatprep.subr.mxu0 0.0
        %529 = vmatpush1.msra.mxu0 %v336
        %530 = vmatprep.subr.mxu0 0.0
        %531 = vmatpush1.msra.mxu0 %v335
        %532 = vmatprep.subr.mxu0 0.0
        %533 = vmatpush1.msra.mxu0 %v334
        %534 = vmatprep.subr.mxu0 0.0
        %535 = vmatpush1.msra.mxu0 %v333
        %536 = vmatprep.subr.mxu0 0.0
        %537 = vmatpush1.msra.mxu0 %v332
        %538 = vmatprep.subr.mxu0 0.0
        %539 = vmatpush2.msra.mxu0 0.0
        %540 = vmatprep.subr.mxu0 0.0
        %541 = vmatpush2.msra.mxu0 0.0
        %542 = vmatprep.subr.mxu0 0.0
        %543 = vmatpush2.msra.mxu0 0.0
        %544 = vmatprep.subr.mxu0 0.0
        %545 = vmatpush2.msra.mxu0 0.0
        %546 = vmatprep.subr.mxu0 0.0
        %547 = vmatpush2.msra.mxu0 0.0
        %548 = vmatprep.subr.mxu0 0.0
        %549 = vmatpush2.msra.mxu0 0.0
        %550 = vmatprep.subr.mxu0 0.0
        %551 = vmatpush2.msra.mxu0 0.0
        %552 = vmatprep.subr.mxu0 0.0
        %553 = vmatpush2.msra.mxu0 0.0
        %554 = vmatprep.subr.mxu0 0.0
        %555 = vmatpush2.msra.mxu0 0.0
        %556 = vmatprep.subr.mxu0 0.0
        %557 = vmatpush2.msra.mxu0 0.0
        %558 = vmatprep.subr.mxu0 0.0
        %559 = vmatpush2.msra.mxu0 0.0
        %560 = vmatprep.subr.mxu0 0.0
        %561 = vmatpush2.msra.mxu0 0.0
        %562 = vmatprep.subr.mxu0 0.0
        %563 = vmatpush2.msra.mxu0 0.0
        %564 = vmatprep.subr.mxu0 0.0
        %565 = vmatpush2.msra.mxu0 0.0
        %566 = vmatprep.subr.mxu0 0.0
        %567 = vmatpush2.msra.mxu0 0.0
        %568 = vmatprep.subr.mxu0 0.0
        %569 = vmatpush2.msra.mxu0 0.0
        %570 = vmatprep.mubr.f32.mxu0 0.0
        %571 = vmatmul.mubr.f32.gmra.mxu0 %v483
        %v572 = vpop.f32.mrf.mxu0
        %v573 = vadd.f32 %v444, %v572
        %v574 = vpop.f32.mrf.mxu0
        %575 = vmatprep.mubr.f32.mxu0 0.0
        %576 = vmatmul.mubr.f32.gmra.mxu0 %v486
        %v577 = vpop.f32.mrf.mxu0
        %v578 = vadd.f32 %v449, %v577
        %v579 = vpop.f32.mrf.mxu0
        %580 = vmatprep.mubr.f32.mxu0 0.0
        %581 = vmatmul.mubr.f32.gmra.mxu0 %v489
        %v582 = vpop.f32.mrf.mxu0
        %v583 = vadd.f32 %v454, %v582
        %v584 = vpop.f32.mrf.mxu0
        %585 = vmatprep.mubr.f32.mxu0 0.0
        %586 = vmatmul.mubr.f32.gmra.mxu0 %v492
        %v587 = vpop.f32.mrf.mxu0
        %v588 = vadd.f32 %v459, %v587
        %v589 = vpop.f32.mrf.mxu0
        %590 = vmatprep.mubr.f32.mxu0 0.0
        %591 = vmatmul.mubr.f32.gmra.mxu0 %v495
        %v592 = vpop.f32.mrf.mxu0
        %v593 = vadd.f32 %v464, %v592
        %v594 = vpop.f32.mrf.mxu0
        %595 = vmatprep.mubr.f32.mxu0 0.0
        %596 = vmatmul.mubr.f32.gmra.mxu0 %v498
        %v597 = vpop.f32.mrf.mxu0
        %v598 = vadd.f32 %v469, %v597
        %v599 = vpop.f32.mrf.mxu0
        %600 = vmatprep.mubr.f32.mxu0 0.0
        %601 = vmatmul.mubr.f32.gmra.mxu0 %v501
        %v602 = vpop.f32.mrf.mxu0
        %v603 = vadd.f32 %v474, %v602
        %v604 = vpop.f32.mrf.mxu0
        %605 = vmatprep.mubr.f32.mxu0 0.0
        %606 = vmatmul.mubr.f32.gmra.mxu0 %v504
        %v607 = vpop.f32.mrf.mxu0
        %v608 = vadd.f32 %v479, %v607
        %v609 = vpop.f32.mrf.mxu0
        %610 = vdwg.mxu0
        %v611 = vld [vmem:[%s321] sm:$0xff]
        %v612 = vld [vmem:[%s321 + $0x8] sm:$0xff]
        %v613 = vld [vmem:[%s321 + $0x10] sm:$0xff]
        %v614 = vld [vmem:[%s321 + $0x18] sm:$0xff]
        %v615 = vld [vmem:[%s321 + $0x20] sm:$0xff]
        %v616 = vld [vmem:[%s321 + $0x28] sm:$0xff]
        %v617 = vld [vmem:[%s321 + $0x30] sm:$0xff]
        %v618 = vld [vmem:[%s321 + $0x38] sm:$0xff]
        %v619 = vld [vmem:[%s5] sm:$0xff]
        %v620 = vld [vmem:[%s5 + $0x8] sm:$0xff]
        %v621 = vld [vmem:[%s5 + $0x10] sm:$0xff]
        %v622 = vld [vmem:[%s5 + $0x18] sm:$0xff]
        %v623 = vld [vmem:[%s5 + $0x20] sm:$0xff]
        %v624 = vld [vmem:[%s5 + $0x28] sm:$0xff]
        %v626 = vsel %vm352, %v611, 0
        %v629 = vsel %vm352, %v612, 0
        %v632 = vsel %vm352, %v613, 0
        %v635 = vsel %vm352, %v614, 0
        %v638 = vsel %vm352, %v615, 0
        %v641 = vsel %vm352, %v616, 0
        %v644 = vsel %vm352, %v617, 0
        %v647 = vsel %vm352, %v618, 0
        %649 = vmatprep.subr.mxu0 0.0
        %650 = vmatpush1.msra.mxu0 0.0
        %651 = vmatprep.subr.mxu0 0.0
        %652 = vmatpush1.msra.mxu0 0.0
        %653 = vmatprep.subr.mxu0 0.0
        %654 = vmatpush1.msra.mxu0 0.0
        %655 = vmatprep.subr.mxu0 0.0
        %656 = vmatpush1.msra.mxu0 0.0
        %657 = vmatprep.subr.mxu0 0.0
        %658 = vmatpush1.msra.mxu0 0.0
        %659 = vmatprep.subr.mxu0 0.0
        %660 = vmatpush1.msra.mxu0 0.0
        %661 = vmatprep.subr.mxu0 0.0
        %662 = vmatpush1.msra.mxu0 0.0
        %663 = vmatprep.subr.mxu0 0.0
        %664 = vmatpush1.msra.mxu0 0.0
        %665 = vmatprep.subr.mxu0 0.0
        %666 = vmatpush1.msra.mxu0 0.0
        %667 = vmatprep.subr.mxu0 0.0
        %668 = vmatpush1.msra.mxu0 0.0
        %669 = vmatprep.subr.mxu0 0.0
        %670 = vmatpush1.msra.mxu0 %v624
        %671 = vmatprep.subr.mxu0 0.0
        %672 = vmatpush1.msra.mxu0 %v623
        %673 = vmatprep.subr.mxu0 0.0
        %674 = vmatpush1.msra.mxu0 %v622
        %675 = vmatprep.subr.mxu0 0.0
        %676 = vmatpush1.msra.mxu0 %v621
        %677 = vmatprep.subr.mxu0 0.0
        %678 = vmatpush1.msra.mxu0 %v620
        %679 = vmatprep.subr.mxu0 0.0
        %680 = vmatpush1.msra.mxu0 %v619
        %681 = vmatprep.subr.mxu0 0.0
        %682 = vmatpush2.msra.mxu0 0.0
        %683 = vmatprep.subr.mxu0 0.0
        %684 = vmatpush2.msra.mxu0 0.0
        %685 = vmatprep.subr.mxu0 0.0
        %686 = vmatpush2.msra.mxu0 0.0
        %687 = vmatprep.subr.mxu0 0.0
        %688 = vmatpush2.msra.mxu0 0.0
        %689 = vmatprep.subr.mxu0 0.0
        %690 = vmatpush2.msra.mxu0 0.0
        %691 = vmatprep.subr.mxu0 0.0
        %692 = vmatpush2.msra.mxu0 0.0
        %693 = vmatprep.subr.mxu0 0.0
        %694 = vmatpush2.msra.mxu0 0.0
        %695 = vmatprep.subr.mxu0 0.0
        %696 = vmatpush2.msra.mxu0 0.0
        %697 = vmatprep.subr.mxu0 0.0
        %698 = vmatpush2.msra.mxu0 0.0
        %699 = vmatprep.subr.mxu0 0.0
        %700 = vmatpush2.msra.mxu0 0.0
        %701 = vmatprep.subr.mxu0 0.0
        %702 = vmatpush2.msra.mxu0 0.0
        %703 = vmatprep.subr.mxu0 0.0
        %704 = vmatpush2.msra.mxu0 0.0
        %705 = vmatprep.subr.mxu0 0.0
        %706 = vmatpush2.msra.mxu0 0.0
        %707 = vmatprep.subr.mxu0 0.0
        %708 = vmatpush2.msra.mxu0 0.0
        %709 = vmatprep.subr.mxu0 0.0
        %710 = vmatpush2.msra.mxu0 0.0
        %711 = vmatprep.subr.mxu0 0.0
        %712 = vmatpush2.msra.mxu0 0.0
        %713 = vmatprep.mubr.f32.mxu0 0.0
        %714 = vmatmul.mubr.f32.gmra.mxu0 %v626
        %v715 = vpop.f32.mrf.mxu0
        %v716 = vadd.f32 0.0, %v715
        %v717 = vpop.f32.mrf.mxu0
        %718 = vmatprep.mubr.f32.mxu0 0.0
        %719 = vmatmul.mubr.f32.gmra.mxu0 %v629
        %v720 = vpop.f32.mrf.mxu0
        %v721 = vadd.f32 0.0, %v720
        %v722 = vpop.f32.mrf.mxu0
        %723 = vmatprep.mubr.f32.mxu0 0.0
        %724 = vmatmul.mubr.f32.gmra.mxu0 %v632
        %v725 = vpop.f32.mrf.mxu0
        %v726 = vadd.f32 0.0, %v725
        %v727 = vpop.f32.mrf.mxu0
        %728 = vmatprep.mubr.f32.mxu0 0.0
        %729 = vmatmul.mubr.f32.gmra.mxu0 %v635
        %v730 = vpop.f32.mrf.mxu0
        %v731 = vadd.f32 0.0, %v730
        %v732 = vpop.f32.mrf.mxu0
        %733 = vmatprep.mubr.f32.mxu0 0.0
        %734 = vmatmul.mubr.f32.gmra.mxu0 %v638
        %v735 = vpop.f32.mrf.mxu0
        %v736 = vadd.f32 0.0, %v735
        %v737 = vpop.f32.mrf.mxu0
        %738 = vmatprep.mubr.f32.mxu0 0.0
        %739 = vmatmul.mubr.f32.gmra.mxu0 %v641
        %v740 = vpop.f32.mrf.mxu0
        %v741 = vadd.f32 0.0, %v740
        %v742 = vpop.f32.mrf.mxu0
        %743 = vmatprep.mubr.f32.mxu0 0.0
        %744 = vmatmul.mubr.f32.gmra.mxu0 %v644
        %v745 = vpop.f32.mrf.mxu0
        %v746 = vadd.f32 0.0, %v745
        %v747 = vpop.f32.mrf.mxu0
        %748 = vmatprep.mubr.f32.mxu0 0.0
        %749 = vmatmul.mubr.f32.gmra.mxu0 %v647
        %v750 = vpop.f32.mrf.mxu0
        %v751 = vadd.f32 0.0, %v750
        %v752 = vpop.f32.mrf.mxu0
        %753 = vdwg.mxu0
        %v754 = vadd.f32 %v573, %v716
        %v755 = vadd.f32 %v578, %v721
        %v756 = vadd.f32 %v583, %v726
        %v757 = vadd.f32 %v588, %v731
        %v758 = vadd.f32 %v593, %v736
        %v759 = vadd.f32 %v598, %v741
        %v760 = vadd.f32 %v603, %v746
        %v761 = vadd.f32 %v608, %v751
        %v762 = vld [vmem:[%s6] sm:$0x1]
        %v764 = vlaneseq
        %v765 = vshrl.u32 %v764, 7
        %v766 = vsub.s32 0, %v765
        %v767 = vrot.slane %v762, %v766
        %v769 = vadd.f32 %v754, %v767
        %v770 = vadd.f32 %v755, %v767
        %v771 = vadd.f32 %v756, %v767
        %v772 = vadd.f32 %v757, %v767
        %v773 = vadd.f32 %v758, %v767
        %v774 = vadd.f32 %v759, %v767
        %v775 = vadd.f32 %v760, %v767
        %v776 = vadd.f32 %v761, %v767
        %777 = vst [vmem:[%s304] sm:$0xff] %v769
        %778 = vst [vmem:[%s304 + $0x8] sm:$0xff] %v770
        %779 = vst [vmem:[%s304 + $0x10] sm:$0xff] %v771
        %780 = vst [vmem:[%s304 + $0x18] sm:$0xff] %v772
        %781 = vst [vmem:[%s304 + $0x20] sm:$0xff] %v773
        %782 = vst [vmem:[%s304 + $0x28] sm:$0xff] %v774
        %783 = vst [vmem:[%s304 + $0x30] sm:$0xff] %v775
        %784 = vst [vmem:[%s304 + $0x38] sm:$0xff] %v776
        %s785 = sand.u32 %s191, 1
        %s786 = scalar_lea.sflag [#allocation3], %s785
        %s787 = sand.u32 %s191, 1
        %s788 = smul.addr %s787, 64
        %s789 = scalar_lea.vmem [#allocation2], %s788
        // Predicated region
        $region49: #{tpu_custom_call.1} parent=47 // pred_check
          %p790 = pneg %p201
        $region50: #{tpu_custom_call.1} parent=47 // pred_check_branch
          %792 = sbr.rel (%p790) target = $region52
        $region51: #{tpu_custom_call.1} parent=47 // pred_region
          %s793 = smul.u32 8, %s21
          %s795 = ssub.s32 1024, 1024
          %796 = vsyncadd %s786, %s795
          %s797 = smul.addr %s793, 128
          %s798 = scalar_lea.hbm %s7, %s797
          %s799 = sshll.u32 %s789, 4
          %s800 = int_to_ptr.vmem [resolvable:$true] %s799
          %805 = dma.vmem_to_hbm [thread:$0]  %s800, 1024, %s798, %s786, 128, 128, 8
        $region52: #{tpu_custom_call.1} parent=47 // pred_fallthru
          _
      $region48: #{tpu_custom_call.1} parent=5 // pred_fallthru
        _
      %p806 = scmp.le.s32.totalorder 2, %s16
      // Predicated region
      $region53: #{tpu_custom_call.1} parent=5 // pred_check
        %p807 = pneg %p806
      $region54: #{tpu_custom_call.1} parent=5 // pred_check_branch
        %809 = sbr.rel (%p807) target = $region56
      $region55: #{tpu_custom_call.1} parent=5 // pred_region
        %s810 = ssub.s32 %s16, 2
        // Predicated region
        $region57: #{tpu_custom_call.1} parent=55 // pred_check
          %p811 = pneg %p207
        $region58: #{tpu_custom_call.1} parent=55 // pred_check_branch
          %813 = sbr.rel (%p811) target = $region60
        $region59: #{tpu_custom_call.1} parent=55 // pred_region
          %s814 = sand.u32 %s192, 1
          %s815 = scalar_lea.sflag [#allocation3], %s814
          %s816 = sand.u32 %s192, 1
          %s817 = smul.addr %s816, 64
          %s818 = scalar_lea.vmem [#allocation2], %s817
          %819 = dma.done %s815, 1024
        $region60: #{tpu_custom_call.1} parent=55 // pred_fallthru
          _
      $region56: #{tpu_custom_call.1} parent=5 // pred_fallthru
        _
    $region6: #{tpu_custom_call.1} parent=1 // loop_footer
      %s20 = sadd.s32 1, %s16
    $region7: #{tpu_custom_call.1} parent=1 // loop_footer_branch
      %15 = sbr.rel target = $region3
    $region8: #{tpu_custom_call.1} parent=1 // loop_exit
      _
    %820 = vsyncpa [#allocation3], 1
    %s821 = scalar_lea.sflag [#allocation3], 1
    %822 = vsyncpa %s821, 1

</llo_original>
